<compile_context>
chip_gen: v5e
topology: v5e:2x2
jax: 0.10.0
libtpu: 0.0.40
codegen_flags: <defaults>
</compile_context>

<pallas_src>
import math

import jax
import jax.numpy as jnp
from jax.experimental import pallas as pl
from jax.experimental.pallas import tpu as pltpu


# ----------------------------------------------------------------------------
# Concrete instantiation of the genome-defined network
# ----------------------------------------------------------------------------
IDENTITY = lambda y: y
TANH = jnp.tanh
SIGMOID = jax.nn.sigmoid

LAYER_SIZES = {"I": 16, "H1": 32, "H2": 32, "O": 8}
CONNECTIONS = [("I", "H1"), ("I", "H2"), ("H1", "H2"), ("H1", "O"), ("H2", "O")]

FORWARD_CONFIG = {
    "step1": {
        "layer_input": {"activation": IDENTITY, "norm": False,
                        "layer": [("I", "output")]},
        "layer_output": {"H1": {"activation": TANH, "norm": True},
                         "H2": {"activation": TANH, "norm": True}},
    },
    "step2": {
        "layer_input": {"activation": IDENTITY, "norm": False,
                        "layer": [("H1", "output")]},
        "layer_output": {"H2": {"activation": TANH, "norm": True},
                         "O": {"activation": IDENTITY, "norm": False}},
    },
    "step3": {
        "layer_input": {"activation": IDENTITY, "norm": False,
                        "layer": [("H2", "output")]},
        "layer_output": {"O": {"activation": IDENTITY, "norm": False}},
    },
    "O": {"activation": SIGMOID, "norm": False},
}
FORWARD_ORDER = ["step1", "step2", "step3"]

# TODO(synk): the torch module's recurrent 'output_prev' state (stateful across
# forward calls) is not modeled; this forward_config only reads 'output'.

# ----------------------------------------------------------------------------
# Packed-parameter slab layout (single operand -> single DMA)
# ----------------------------------------------------------------------------
LANE = 128                   # lane width of a vreg
SLAB_COLS = 2 * LANE         # two 128-lane target slots per row block
R_W1 = 0                     # rows   0..127 : W[I ->H1] | W[I ->H2]
R_W2 = 128                   # rows 128..255 : W[H1->H2] | W[H1->O ]
R_W3 = 256                   # rows 256..383 : W[H2->O ] | (unused)
R_VEC = 384                  # rows 384..391 : biases / LayerNorm gamma,beta
SLAB_ROWS = R_VEC + 8        # 392 (multiple of 8 sublanes)
LN_EPS = 1e-5


def _ln_pad(y, gamma, beta, real_n):
    """LayerNorm over the first `real_n` lanes of a zero-padded 128-lane block.

    Padded lanes of y / gamma / beta are exactly zero, so whole-row sums equal
    the real-width sums; one pass yields both moments (mean, E[y^2]).  Matches
    torch.nn.LayerNorm (biased variance, eps=1e-5) on the real lanes and keeps
    padded lanes at zero (gamma=beta=0 there).
    """
    inv_n = 1.0 / float(real_n)
    s1 = jnp.sum(y, axis=-1, keepdims=True)
    s2 = jnp.sum(y * y, axis=-1, keepdims=True)
    mean = s1 * inv_n
    var = s2 * inv_n - mean * mean
    return (y - mean) * jax.lax.rsqrt(var + LN_EPS) * gamma + beta


# ----------------------------------------------------------------------------
# Fused Pallas kernel: the entire forward DAG for one batch tile
# ----------------------------------------------------------------------------
def _fused_forward_kernel(x_ref, p_ref, o_ref):
    x = x_ref[...]                                      # (TB, 128) f32, lanes >=16 zero

    w1 = p_ref[R_W1:R_W1 + LANE, :]                     # (128, 256)  I  -> H1 | H2
    w2 = p_ref[R_W2:R_W2 + LANE, :]                     # (128, 256)  H1 -> H2 | O
    w3 = p_ref[R_W3:R_W3 + LANE, 0:LANE]                # (128, 128)  H2 -> O
    vec = p_ref[R_VEC:R_VEC + 8, :]                     # (8, 256)    bias / LN params

    b_h1, b_h2 = vec[0:1, 0:LANE], vec[0:1, LANE:]
    b_o = vec[1:2, 0:LANE]
    g_h1, g_h2 = vec[2:3, 0:LANE], vec[2:3, LANE:]
    be_h1, be_h2 = vec[3:4, 0:LANE], vec[3:4, LANE:]

    # step1: I -> {H1, H2}  (one merged dot; split at the 128-lane boundary)
    y = jnp.dot(x, w1, preferred_element_type=jnp.float32)         # (TB, 256)
    h1 = jnp.tanh(_ln_pad(y[:, 0:LANE] + b_h1, g_h1, be_h1, LAYER_SIZES["H1"]))
    h2 = jnp.tanh(_ln_pad(y[:, LANE:] + b_h2, g_h2, be_h2, LAYER_SIZES["H2"]))

    # step2: H1 -> {H2, O}
    y = jnp.dot(h1, w2, preferred_element_type=jnp.float32)        # (TB, 256)
    h2 = h2 + jnp.tanh(_ln_pad(y[:, 0:LANE] + b_h2, g_h2, be_h2, LAYER_SIZES["H2"]))
    o = y[:, LANE:] + b_o                                          # identity act, no norm

    # step3: H2 -> O
    o = o + jnp.dot(h2, w3, preferred_element_type=jnp.float32) + b_o

    # final O activation (norm=False for this config); lane-dense store.
    o_ref[...] = jax.nn.sigmoid(o)


# ----------------------------------------------------------------------------
# Wrapper: padding, grid over batch tiles, parameter packing
# ----------------------------------------------------------------------------
@jax.jit
def _forward_padded(packed, xp):
    bp = xp.shape[0]
    tile_b = min(bp, 128)
    grid = (bp // tile_b,)
    # Advisory cost estimate (padded shapes), keeps XLA scheduling tight.
    flops = bp * 2 * (LANE * SLAB_COLS + LANE * SLAB_COLS + LANE * LANE)
    transcendentals = bp * (4 * LANE + 3)
    bytes_accessed = (SLAB_ROWS * SLAB_COLS + 2 * bp * LANE) * 4
    return pl.pallas_call(
        _fused_forward_kernel,
        out_shape=jax.ShapeDtypeStruct((bp, LANE), jnp.float32),
        grid=grid,
        in_specs=[pl.BlockSpec((tile_b, LANE), lambda i: (i, 0)),
                  pl.BlockSpec((SLAB_ROWS, SLAB_COLS), lambda i: (0, 0))],
        out_specs=pl.BlockSpec((tile_b, LANE), lambda i: (i, 0)),
        compiler_params=pltpu.CompilerParams(
            dimension_semantics=("parallel",),
            vmem_limit_bytes=8 * 1024 * 1024),
        cost_estimate=pl.CostEstimate(flops=flops,
                                      transcendentals=transcendentals,
                                      bytes_accessed=bytes_accessed),
    )(xp, packed)


def forward_pallas(packed_params, input_raw):
    """Reproduces NN_Custom_torch_2.forward (1-D input) and a batched variant."""
    x = jnp.asarray(input_raw, jnp.float32)
    single = x.ndim == 1
    if single:
        x = x[None, :]
    b = x.shape[0]
    tile_b = 128 if b >= 128 else max(8, ((b + 7) // 8) * 8)
    bp = ((b + tile_b - 1) // tile_b) * tile_b
    xp = jnp.zeros((bp, LANE), jnp.float32).at[:b, :LAYER_SIZES["I"]].set(x)
    out = _forward_padded(packed_params, xp)[:b, :LAYER_SIZES["O"]]
    return out[0] if single else out


# ----------------------------------------------------------------------------
# Parameter init (torch shapes / default inits) and one-time packing
# ----------------------------------------------------------------------------
def init_params(key):
    params = {"conn": {}, "bias": {}, "ln_w": {}, "ln_b": {}}
    for src, tgt in CONNECTIONS:
        key, sub = jax.random.split(key)
        in_s, out_s = LAYER_SIZES[src], LAYER_SIZES[tgt]
        bound = 1.0 / math.sqrt(in_s)          # nn.Linear default (fan_in uniform)
        # stored transposed as (in, out) so the kernel computes x @ W
        params["conn"][f"{src}->{tgt}"] = jax.random.uniform(
            sub, (in_s, out_s), jnp.float32, minval=-bound, maxval=bound)
    for name, size in LAYER_SIZES.items():
        params["bias"][name] = jnp.zeros((size,), jnp.float32)   # torch.zeros
        params["ln_w"][name] = jnp.ones((size,), jnp.float32)    # LayerNorm defaults
        params["ln_b"][name] = jnp.zeros((size,), jnp.float32)
    return params


def pack_params(params):
    """Pack all weights / biases / LayerNorm params into one lane-dense slab."""
    s = jnp.zeros((SLAB_ROWS, SLAB_COLS), jnp.float32)
    s = s.at[R_W1:R_W1 + 16, 0:32].set(params["conn"]["I->H1"])
    s = s.at[R_W1:R_W1 + 16, LANE:LANE + 32].set(params["conn"]["I->H2"])
    s = s.at[R_W2:R_W2 + 32, 0:32].set(params["conn"]["H1->H2"])
    s = s.at[R_W2:R_W2 + 32, LANE:LANE + 8].set(params["conn"]["H1->O"])
    s = s.at[R_W3:R_W3 + 32, 0:8].set(params["conn"]["H2->O"])
    s = s.at[R_VEC + 0, 0:32].set(params["bias"]["H1"])
    s = s.at[R_VEC + 0, LANE:LANE + 32].set(params["bias"]["H2"])
    s = s.at[R_VEC + 1, 0:8].set(params["bias"]["O"])
    s = s.at[R_VEC + 2, 0:32].set(params["ln_w"]["H1"])
    s = s.at[R_VEC + 2, LANE:LANE + 32].set(params["ln_w"]["H2"])
    s = s.at[R_VEC + 3, 0:32].set(params["ln_b"]["H1"])
    s = s.at[R_VEC + 3, LANE:LANE + 32].set(params["ln_b"]["H2"])
    return s


# ----------------------------------------------------------------------------
# Pure-JAX reference (mirrors the torch forward loop) for verification
# ----------------------------------------------------------------------------
def _layernorm_ref(y, g, b):
    m = jnp.mean(y, axis=-1, keepdims=True)
    v = jnp.mean((y - m) ** 2, axis=-1, keepdims=True)
    return (y - m) * jax.lax.rsqrt(v + LN_EPS) * g + b


def forward_reference(params, input_raw):
    x = jnp.asarray(input_raw, jnp.float32)
    single = x.ndim == 1
    if single:
        x = x[None, :]
    b = x.shape[0]
    outputs = {name: jnp.zeros((b, size), jnp.float32)
               for name, size in LAYER_SIZES.items()}
    outputs["I"] = outputs["I"] + x
    for order in FORWARD_ORDER:
        cfg = FORWARD_CONFIG[order]
        in_act, in_norm = cfg["layer_input"]["activation"], cfg["layer_input"]["norm"]
        for in_name, _tensor in cfg["layer_input"]["layer"]:
            xin = outputs[in_name]
            for out_name, out_cfg in cfg["layer_output"].items():
                y = xin @ params["conn"][f"{in_name}->{out_name}"] + params["bias"][out_name]
                if in_norm or out_cfg["norm"]:
                    y = _layernorm_ref(y, params["ln_w"][out_name], params["ln_b"][out_name])
                outputs[out_name] = outputs[out_name] + out_cfg["activation"](in_act(y))
    y = outputs["O"]
    if FORWARD_CONFIG["O"]["norm"]:
        y = _layernorm_ref(y, params["ln_w"]["O"], params["ln_b"]["O"])
    y = FORWARD_CONFIG["O"]["activation"](y)
    return y[0] if single else y


if __name__ == "__main__":
    key = jax.random.PRNGKey(0)
    key, pkey, xkey = jax.random.split(key, 3)
    params = init_params(pkey)
    packed = pack_params(params)               # one-time packing, outside hot path

    # Batched check (B multiple of 8 keeps the f32 sublane full).
    xb = jax.random.normal(xkey, (8, LAYER_SIZES["I"]), jnp.float32)
    out_b = jax.block_until_ready(forward_pallas(packed, xb))
    ref_b = jax.block_until_ready(forward_reference(params, xb))
    assert out_b.shape == (8, LAYER_SIZES["O"])
    assert jnp.allclose(out_b, ref_b, atol=1e-4, rtol=1e-4), \
        float(jnp.max(jnp.abs(out_b - ref_b)))

    # Single-vector check (matches the torch module's 1-D forward signature).
    out_1 = jax.block_until_ready(forward_pallas(packed, xb[0]))
    ref_1 = forward_reference(params, xb[0])
    assert out_1.shape == (LAYER_SIZES["O"],)
    assert jnp.allclose(out_1, ref_1, atol=1e-4, rtol=1e-4)

    print("KERNEL_OK")
</pallas_src>

<mosaic_0001>
module attributes {stable_mosaic.version = 11 : i64} {
  func.func @_fused_forward_kernel(%arg0: i32, %arg1: memref<8x128xf32, #tpu.memory_space<vmem>>, %arg2: memref<392x256xf32, #tpu.memory_space<vmem>>, %arg3: memref<8x128xf32, #tpu.memory_space<vmem>>) attributes {dimension_semantics = [#tpu.dimension_semantics<parallel>], iteration_bounds = array<i64: 1>, scalar_prefetch = 0 : i64, scratch_operands = 0 : i64, tpu.core_type = #tpu.core_type<tc>, window_params = [{transform_indices = @transform_0, window_bounds = array<i64: 8, 128>}, {pipeline_mode = #tpu.pipeline_mode<synchronous>, transform_indices = @transform_1, window_bounds = array<i64: 392, 256>}, {transform_indices = @transform_2, window_bounds = array<i64: 8, 128>}]} {
    %c0 = arith.constant 0 : index
    %c0_0 = arith.constant 0 : index
    %0 = vector.load %arg1[%c0, %c0_0] : memref<8x128xf32, #tpu.memory_space<vmem>>, vector<8x128xf32>
    %c0_1 = arith.constant 0 : index
    %c0_2 = arith.constant 0 : index
    %1 = vector.load %arg2[%c0_1, %c0_2] : memref<392x256xf32, #tpu.memory_space<vmem>>, vector<128x256xf32>
    %c128 = arith.constant 128 : index
    %c0_3 = arith.constant 0 : index
    %2 = vector.load %arg2[%c128, %c0_3] : memref<392x256xf32, #tpu.memory_space<vmem>>, vector<128x256xf32>
    %c256 = arith.constant 256 : index
    %c0_4 = arith.constant 0 : index
    %3 = vector.load %arg2[%c256, %c0_4] : memref<392x256xf32, #tpu.memory_space<vmem>>, vector<128x128xf32>
    %c384 = arith.constant 384 : index
    %c0_5 = arith.constant 0 : index
    %4 = vector.load %arg2[%c384, %c0_5] : memref<392x256xf32, #tpu.memory_space<vmem>>, vector<8x256xf32>
    %5 = vector.extract_strided_slice %4 {offsets = [0, 0], sizes = [1, 128], strides = [1, 1]} : vector<8x256xf32> to vector<1x128xf32>
    %6 = vector.extract_strided_slice %4 {offsets = [0, 128], sizes = [1, 128], strides = [1, 1]} : vector<8x256xf32> to vector<1x128xf32>
    %7 = vector.extract_strided_slice %4 {offsets = [1, 0], sizes = [1, 128], strides = [1, 1]} : vector<8x256xf32> to vector<1x128xf32>
    %8 = vector.extract_strided_slice %4 {offsets = [2, 0], sizes = [1, 128], strides = [1, 1]} : vector<8x256xf32> to vector<1x128xf32>
    %9 = vector.extract_strided_slice %4 {offsets = [2, 128], sizes = [1, 128], strides = [1, 1]} : vector<8x256xf32> to vector<1x128xf32>
    %10 = vector.extract_strided_slice %4 {offsets = [3, 0], sizes = [1, 128], strides = [1, 1]} : vector<8x256xf32> to vector<1x128xf32>
    %11 = vector.extract_strided_slice %4 {offsets = [3, 128], sizes = [1, 128], strides = [1, 1]} : vector<8x256xf32> to vector<1x128xf32>
    %cst = arith.constant dense<0.000000e+00> : vector<8x256xf32>
    %12 = tpu.matmul %0, %1, %cst {dimension_numbers = #tpu.dot_dimension_numbers<[1], [0], [0], [1], [0, 0, 1, 1], [], []>} : vector<8x128xf32>, vector<128x256xf32>, vector<8x256xf32> -> vector<8x256xf32>
    %13 = vector.extract_strided_slice %12 {offsets = [0, 0], sizes = [8, 128], strides = [1, 1]} : vector<8x256xf32> to vector<8x128xf32>
    %14 = vector.broadcast %5 : vector<1x128xf32> to vector<8x128xf32>
    %15 = arith.addf %13, %14 : vector<8x128xf32>
    %cst_6 = arith.constant dense<0.000000e+00> : vector<8xf32>
    %16 = vector.multi_reduction <add>, %15, %cst_6 [1] : vector<8x128xf32> to vector<8xf32>
    %17 = vector.shape_cast %16 : vector<8xf32> to vector<8x1xf32>
    %18 = arith.mulf %15, %15 : vector<8x128xf32>
    %cst_7 = arith.constant dense<0.000000e+00> : vector<8xf32>
    %19 = vector.multi_reduction <add>, %18, %cst_7 [1] : vector<8x128xf32> to vector<8xf32>
    %20 = vector.shape_cast %19 : vector<8xf32> to vector<8x1xf32>
    %cst_8 = arith.constant 3.125000e-02 : f32
    %21 = vector.broadcast %cst_8 : f32 to vector<8x1xf32>
    %22 = arith.mulf %17, %21 : vector<8x1xf32>
    %cst_9 = arith.constant 3.125000e-02 : f32
    %23 = vector.broadcast %cst_9 : f32 to vector<8x1xf32>
    %24 = arith.mulf %20, %23 : vector<8x1xf32>
    %25 = arith.mulf %22, %22 : vector<8x1xf32>
    %26 = arith.subf %24, %25 : vector<8x1xf32>
    %27 = vector.broadcast %22 : vector<8x1xf32> to vector<8x128xf32>
    %28 = arith.subf %15, %27 : vector<8x128xf32>
    %cst_10 = arith.constant 9.99999974E-6 : f32
    %29 = vector.broadcast %cst_10 : f32 to vector<8x1xf32>
    %30 = arith.addf %26, %29 : vector<8x1xf32>
    %31 = math.rsqrt %30 : vector<8x1xf32>
    %32 = vector.broadcast %31 : vector<8x1xf32> to vector<8x128xf32>
    %33 = arith.mulf %28, %32 : vector<8x128xf32>
    %34 = vector.broadcast %8 : vector<1x128xf32> to vector<8x128xf32>
    %35 = arith.mulf %33, %34 : vector<8x128xf32>
    %36 = vector.broadcast %10 : vector<1x128xf32> to vector<8x128xf32>
    %37 = arith.addf %35, %36 : vector<8x128xf32>
    %38 = math.tanh %37 : vector<8x128xf32>
    %39 = vector.extract_strided_slice %12 {offsets = [0, 128], sizes = [8, 128], strides = [1, 1]} : vector<8x256xf32> to vector<8x128xf32>
    %40 = vector.broadcast %6 : vector<1x128xf32> to vector<8x128xf32>
    %41 = arith.addf %39, %40 : vector<8x128xf32>
    %cst_11 = arith.constant dense<0.000000e+00> : vector<8xf32>
    %42 = vector.multi_reduction <add>, %41, %cst_11 [1] : vector<8x128xf32> to vector<8xf32>
    %43 = vector.shape_cast %42 : vector<8xf32> to vector<8x1xf32>
    %44 = arith.mulf %41, %41 : vector<8x128xf32>
    %cst_12 = arith.constant dense<0.000000e+00> : vector<8xf32>
    %45 = vector.multi_reduction <add>, %44, %cst_12 [1] : vector<8x128xf32> to vector<8xf32>
    %46 = vector.shape_cast %45 : vector<8xf32> to vector<8x1xf32>
    %cst_13 = arith.constant 3.125000e-02 : f32
    %47 = vector.broadcast %cst_13 : f32 to vector<8x1xf32>
    %48 = arith.mulf %43, %47 : vector<8x1xf32>
    %cst_14 = arith.constant 3.125000e-02 : f32
    %49 = vector.broadcast %cst_14 : f32 to vector<8x1xf32>
    %50 = arith.mulf %46, %49 : vector<8x1xf32>
    %51 = arith.mulf %48, %48 : vector<8x1xf32>
    %52 = arith.subf %50, %51 : vector<8x1xf32>
    %53 = vector.broadcast %48 : vector<8x1xf32> to vector<8x128xf32>
    %54 = arith.subf %41, %53 : vector<8x128xf32>
    %cst_15 = arith.constant 9.99999974E-6 : f32
    %55 = vector.broadcast %cst_15 : f32 to vector<8x1xf32>
    %56 = arith.addf %52, %55 : vector<8x1xf32>
    %57 = math.rsqrt %56 : vector<8x1xf32>
    %58 = vector.broadcast %57 : vector<8x1xf32> to vector<8x128xf32>
    %59 = arith.mulf %54, %58 : vector<8x128xf32>
    %60 = vector.broadcast %9 : vector<1x128xf32> to vector<8x128xf32>
    %61 = arith.mulf %59, %60 : vector<8x128xf32>
    %62 = vector.broadcast %11 : vector<1x128xf32> to vector<8x128xf32>
    %63 = arith.addf %61, %62 : vector<8x128xf32>
    %64 = math.tanh %63 : vector<8x128xf32>
    %cst_16 = arith.constant dense<0.000000e+00> : vector<8x256xf32>
    %65 = tpu.matmul %38, %2, %cst_16 {dimension_numbers = #tpu.dot_dimension_numbers<[1], [0], [0], [1], [0, 0, 1, 1], [], []>} : vector<8x128xf32>, vector<128x256xf32>, vector<8x256xf32> -> vector<8x256xf32>
    %66 = vector.extract_strided_slice %65 {offsets = [0, 0], sizes = [8, 128], strides = [1, 1]} : vector<8x256xf32> to vector<8x128xf32>
    %67 = vector.broadcast %6 : vector<1x128xf32> to vector<8x128xf32>
    %68 = arith.addf %66, %67 : vector<8x128xf32>
    %cst_17 = arith.constant dense<0.000000e+00> : vector<8xf32>
    %69 = vector.multi_reduction <add>, %68, %cst_17 [1] : vector<8x128xf32> to vector<8xf32>
    %70 = vector.shape_cast %69 : vector<8xf32> to vector<8x1xf32>
    %71 = arith.mulf %68, %68 : vector<8x128xf32>
    %cst_18 = arith.constant dense<0.000000e+00> : vector<8xf32>
    %72 = vector.multi_reduction <add>, %71, %cst_18 [1] : vector<8x128xf32> to vector<8xf32>
    %73 = vector.shape_cast %72 : vector<8xf32> to vector<8x1xf32>
    %cst_19 = arith.constant 3.125000e-02 : f32
    %74 = vector.broadcast %cst_19 : f32 to vector<8x1xf32>
    %75 = arith.mulf %70, %74 : vector<8x1xf32>
    %cst_20 = arith.constant 3.125000e-02 : f32
    %76 = vector.broadcast %cst_20 : f32 to vector<8x1xf32>
    %77 = arith.mulf %73, %76 : vector<8x1xf32>
    %78 = arith.mulf %75, %75 : vector<8x1xf32>
    %79 = arith.subf %77, %78 : vector<8x1xf32>
    %80 = vector.broadcast %75 : vector<8x1xf32> to vector<8x128xf32>
    %81 = arith.subf %68, %80 : vector<8x128xf32>
    %cst_21 = arith.constant 9.99999974E-6 : f32
    %82 = vector.broadcast %cst_21 : f32 to vector<8x1xf32>
    %83 = arith.addf %79, %82 : vector<8x1xf32>
    %84 = math.rsqrt %83 : vector<8x1xf32>
    %85 = vector.broadcast %84 : vector<8x1xf32> to vector<8x128xf32>
    %86 = arith.mulf %81, %85 : vector<8x128xf32>
    %87 = vector.broadcast %9 : vector<1x128xf32> to vector<8x128xf32>
    %88 = arith.mulf %86, %87 : vector<8x128xf32>
    %89 = vector.broadcast %11 : vector<1x128xf32> to vector<8x128xf32>
    %90 = arith.addf %88, %89 : vector<8x128xf32>
    %91 = math.tanh %90 : vector<8x128xf32>
    %92 = arith.addf %64, %91 : vector<8x128xf32>
    %93 = vector.extract_strided_slice %65 {offsets = [0, 128], sizes = [8, 128], strides = [1, 1]} : vector<8x256xf32> to vector<8x128xf32>
    %94 = vector.broadcast %7 : vector<1x128xf32> to vector<8x128xf32>
    %95 = arith.addf %93, %94 : vector<8x128xf32>
    %cst_22 = arith.constant dense<0.000000e+00> : vector<8x128xf32>
    %96 = tpu.matmul %92, %3, %cst_22 {dimension_numbers = #tpu.dot_dimension_numbers<[1], [0], [0], [1], [0, 0, 1, 1], [], []>} : vector<8x128xf32>, vector<128x128xf32>, vector<8x128xf32> -> vector<8x128xf32>
    %97 = arith.addf %95, %96 : vector<8x128xf32>
    %98 = vector.broadcast %7 : vector<1x128xf32> to vector<8x128xf32>
    %99 = arith.addf %97, %98 : vector<8x128xf32>
    %100 = arith.negf %99 : vector<8x128xf32>
    %101 = math.exp %100 : vector<8x128xf32>
    %cst_23 = arith.constant 1.000000e+00 : f32
    %102 = vector.broadcast %cst_23 : f32 to vector<8x128xf32>
    %103 = arith.addf %102, %101 : vector<8x128xf32>
    %104 = arith.divf %102, %103 : vector<8x128xf32>
    %c0_24 = arith.constant 0 : index
    %c0_25 = arith.constant 0 : index
    %105 = vector.load %arg3[%c0_24, %c0_25] : memref<8x128xf32, #tpu.memory_space<vmem>>, vector<8x128xf32>
    tpu.vector_store %arg3[%c0_24, %c0_25], %104 {strides = array<i32>} : memref<8x128xf32, #tpu.memory_space<vmem>>, vector<8x128xf32>,
    return
  }
  func.func @transform_0(%arg0: i32) -> (i32, i32) {
    %c0_i32 = arith.constant 0 : i32
    %c0_i32_0 = arith.constant 0 : i32
    return %arg0, %c0_i32 : i32, i32
  }
  func.func @transform_1(%arg0: i32) -> (i32, i32) {
    %c0_i32 = arith.constant 0 : i32
    %c0_i32_0 = arith.constant 0 : i32
    %c0_i32_1 = arith.constant 0 : i32
    return %c0_i32, %c0_i32_0 : i32, i32
  }
  func.func @transform_2(%arg0: i32) -> (i32, i32) {
    %c0_i32 = arith.constant 0 : i32
    %c0_i32_0 = arith.constant 0 : i32
    return %arg0, %c0_i32 : i32, i32
  }
}

</mosaic_0001>

<llo_original>
// kernel: _forward_padded.1
$region0: #{_forward_padded.1}
  #allocation0 [shape = 'u32[]', space=smem, size = 0x4, offset = 0x4, fixed_abs, tag = 'smem constant byte address 0x4 - core index']
  #allocation1 [shape = 'u32[72,128]{1,0:T(1,128)}', space=vmem, size = 0x9000, scoped, tag = 'internal scratch']
  %s0 = inlined_call_operand.hbm [shape: f32[8,128], index: 0, kind: input, shape index: {}]
  %s1 = inlined_call_operand.hbm [shape: f32[392,256], index: 1, kind: input, shape index: {}]
  %s2 = inlined_call_operand.hbm [shape: f32[8,128], index: 2, kind: output, shape index: {}]
  %s3 = sld [smem:[#allocation0]]
  $region26: #{_forward_padded.1} parent=0
    _
  %s5 = ssub.s32 1, %s3
  %s6 = scalar_select 0, %s5, %s3
  $region1: #{_forward_padded.1} parent=0
    #allocation2 [shape = 'u8[4096]{0}', space=vmem, size = 0x1000, scoped, tag = 'input window, operand 0, single buffered']
    #allocation3 [shape = 's32[1]{0}', space=sflag, size = 0x4, scoped, tag = 'scoped memory for _forward_padded.1']
    #allocation4 [shape = 's32[1]{0}', space=sflag, size = 0x4, scoped, tag = 'scoped memory for _forward_padded.1']
    #allocation5 [shape = 'u8[401408]{0}', space=vmem, size = 0x62000, scoped, tag = 'input window, operand 1, single buffered']
    #allocation6 [shape = 's32[1]{0}', space=sflag, size = 0x4, scoped, tag = 'scoped memory for _forward_padded.1']
    #allocation7 [shape = 'u8[4096]{0}', space=vmem, size = 0x1000, scoped, tag = 'output window, operand 0, single buffered']
    %7 = vsyncpa [#allocation3], 0
    %8 = vsyncpa [#allocation6], 0
    %9 = vsyncpa [#allocation4], 0
    // Predicated region
    $region2: #{_forward_padded.1} parent=1 // pred_check
      _
    $region3: #{_forward_padded.1} parent=1 // pred_check_branch
      %11 = sbr.rel (0) target = $region5
    $region4: #{_forward_padded.1} parent=1 // pred_region
      %13 = vsyncadd [#allocation3], 0
      %s15 = sshll.u32 %s0, 4
      %s16 = int_to_ptr.hbm [resolvable:$true] %s15
      %s17 = sshll.u32 [#allocation2], 4
      %s18 = int_to_ptr.vmem [resolvable:$true] %s17
      %20 = dma.hbm_to_vmem [thread:$0]  %s16, 128, %s18, [#allocation3]
    $region5: #{_forward_padded.1} parent=1 // pred_fallthru
      _
    // Predicated region
    $region6: #{_forward_padded.1} parent=1 // pred_check
      _
    $region7: #{_forward_padded.1} parent=1 // pred_check_branch
      %22 = sbr.rel (0) target = $region9
    $region8: #{_forward_padded.1} parent=1 // pred_region
      %24 = vsyncadd [#allocation6], 0
      %s25 = sshll.u32 %s1, 4
      %s26 = int_to_ptr.hbm [resolvable:$true] %s25
      %s27 = sshll.u32 [#allocation5], 4
      %s28 = int_to_ptr.vmem [resolvable:$true] %s27
      %33 = dma.hbm_to_vmem [thread:$0]  %s26, 12544, %s28, [#allocation6], 256, 256, 16
    $region9: #{_forward_padded.1} parent=1 // pred_fallthru
      _
    // Predicated region
    $region10: #{_forward_padded.1} parent=1 // pred_check
      _
    $region11: #{_forward_padded.1} parent=1 // pred_check_branch
      %35 = sbr.rel (0) target = $region13
    $region12: #{_forward_padded.1} parent=1 // pred_region
      %37 = dma.done [#allocation3], 128
    $region13: #{_forward_padded.1} parent=1 // pred_fallthru
      _
    // Predicated region
    $region14: #{_forward_padded.1} parent=1 // pred_check
      _
    $region15: #{_forward_padded.1} parent=1 // pred_check_branch
      %39 = sbr.rel (0) target = $region17
    $region16: #{_forward_padded.1} parent=1 // pred_region
      %41 = dma.done [#allocation6], 12544
    $region17: #{_forward_padded.1} parent=1 // pred_fallthru
      _
    %v42 = vld [vmem:[#allocation2] sm:$0xff]
    %v43 = vld [vmem:[#allocation5] sm:$0xff]
    %v44 = vld [vmem:[#allocation5 + $0x8] sm:$0xff]
    %v45 = vld [vmem:[#allocation5 + $0x10] sm:$0xff]
    %v46 = vld [vmem:[#allocation5 + $0x18] sm:$0xff]
    %v47 = vld [vmem:[#allocation5 + $0x20] sm:$0xff]
    %v48 = vld [vmem:[#allocation5 + $0x28] sm:$0xff]
    %v49 = vld [vmem:[#allocation5 + $0x30] sm:$0xff]
    %v50 = vld [vmem:[#allocation5 + $0x38] sm:$0xff]
    %v51 = vld [vmem:[#allocation5 + $0x40] sm:$0xff]
    %v52 = vld [vmem:[#allocation5 + $0x48] sm:$0xff]
    %v53 = vld [vmem:[#allocation5 + $0x50] sm:$0xff]
    %v54 = vld [vmem:[#allocation5 + $0x58] sm:$0xff]
    %v55 = vld [vmem:[#allocation5 + $0x60] sm:$0xff]
    %v56 = vld [vmem:[#allocation5 + $0x68] sm:$0xff]
    %v57 = vld [vmem:[#allocation5 + $0x70] sm:$0xff]
    %v58 = vld [vmem:[#allocation5 + $0x78] sm:$0xff]
    %v59 = vld [vmem:[#allocation5 + $0x80] sm:$0xff]
    %v60 = vld [vmem:[#allocation5 + $0x88] sm:$0xff]
    %v61 = vld [vmem:[#allocation5 + $0x90] sm:$0xff]
    %v62 = vld [vmem:[#allocation5 + $0x98] sm:$0xff]
    %v63 = vld [vmem:[#allocation5 + $0xa0] sm:$0xff]
    %v64 = vld [vmem:[#allocation5 + $0xa8] sm:$0xff]
    %v65 = vld [vmem:[#allocation5 + $0xb0] sm:$0xff]
    %v66 = vld [vmem:[#allocation5 + $0xb8] sm:$0xff]
    %v67 = vld [vmem:[#allocation5 + $0xc0] sm:$0xff]
    %v68 = vld [vmem:[#allocation5 + $0xc8] sm:$0xff]
    %v69 = vld [vmem:[#allocation5 + $0xd0] sm:$0xff]
    %v70 = vld [vmem:[#allocation5 + $0xd8] sm:$0xff]
    %v71 = vld [vmem:[#allocation5 + $0xe0] sm:$0xff]
    %v72 = vld [vmem:[#allocation5 + $0xe8] sm:$0xff]
    %v73 = vld [vmem:[#allocation5 + $0xf0] sm:$0xff]
    %v74 = vld [vmem:[#allocation5 + $0xf8] sm:$0xff]
    %v75 = vld [vmem:[#allocation5 + $0x100] sm:$0xff]
    %v76 = vld [vmem:[#allocation5 + $0x108] sm:$0xff]
    %v77 = vld [vmem:[#allocation5 + $0x110] sm:$0xff]
    %v78 = vld [vmem:[#allocation5 + $0x118] sm:$0xff]
    %v79 = vld [vmem:[#allocation5 + $0x120] sm:$0xff]
    %v80 = vld [vmem:[#allocation5 + $0x128] sm:$0xff]
    %v81 = vld [vmem:[#allocation5 + $0x130] sm:$0xff]
    %v82 = vld [vmem:[#allocation5 + $0x138] sm:$0xff]
    %v83 = vld [vmem:[#allocation5 + $0x140] sm:$0xff]
    %v84 = vld [vmem:[#allocation5 + $0x148] sm:$0xff]
    %v85 = vld [vmem:[#allocation5 + $0x150] sm:$0xff]
    %v86 = vld [vmem:[#allocation5 + $0x158] sm:$0xff]
    %v87 = vld [vmem:[#allocation5 + $0x160] sm:$0xff]
    %v88 = vld [vmem:[#allocation5 + $0x168] sm:$0xff]
    %v89 = vld [vmem:[#allocation5 + $0x170] sm:$0xff]
    %v90 = vld [vmem:[#allocation5 + $0x178] sm:$0xff]
    %v91 = vld [vmem:[#allocation5 + $0x180] sm:$0xff]
    %v92 = vld [vmem:[#allocation5 + $0x188] sm:$0xff]
    %v93 = vld [vmem:[#allocation5 + $0x190] sm:$0xff]
    %v94 = vld [vmem:[#allocation5 + $0x198] sm:$0xff]
    %v95 = vld [vmem:[#allocation5 + $0x1a0] sm:$0xff]
    %v96 = vld [vmem:[#allocation5 + $0x1a8] sm:$0xff]
    %v97 = vld [vmem:[#allocation5 + $0x1b0] sm:$0xff]
    %v98 = vld [vmem:[#allocation5 + $0x1b8] sm:$0xff]
    %v99 = vld [vmem:[#allocation5 + $0x1c0] sm:$0xff]
    %v100 = vld [vmem:[#allocation5 + $0x1c8] sm:$0xff]
    %v101 = vld [vmem:[#allocation5 + $0x1d0] sm:$0xff]
    %v102 = vld [vmem:[#allocation5 + $0x1d8] sm:$0xff]
    %v103 = vld [vmem:[#allocation5 + $0x1e0] sm:$0xff]
    %v104 = vld [vmem:[#allocation5 + $0x1e8] sm:$0xff]
    %v105 = vld [vmem:[#allocation5 + $0x1f0] sm:$0xff]
    %v106 = vld [vmem:[#allocation5 + $0x1f8] sm:$0xff]
    %v107 = vld [vmem:[#allocation5 + $0x200] sm:$0xff]
    %v108 = vld [vmem:[#allocation5 + $0x210] sm:$0xff]
    %v109 = vld [vmem:[#allocation5 + $0x220] sm:$0xff]
    %v110 = vld [vmem:[#allocation5 + $0x230] sm:$0xff]
    %v111 = vld [vmem:[#allocation5 + $0x240] sm:$0xff]
    %v112 = vld [vmem:[#allocation5 + $0x250] sm:$0xff]
    %v113 = vld [vmem:[#allocation5 + $0x260] sm:$0xff]
    %v114 = vld [vmem:[#allocation5 + $0x270] sm:$0xff]
    %v115 = vld [vmem:[#allocation5 + $0x280] sm:$0xff]
    %v116 = vld [vmem:[#allocation5 + $0x290] sm:$0xff]
    %v117 = vld [vmem:[#allocation5 + $0x2a0] sm:$0xff]
    %v118 = vld [vmem:[#allocation5 + $0x2b0] sm:$0xff]
    %v119 = vld [vmem:[#allocation5 + $0x2c0] sm:$0xff]
    %v120 = vld [vmem:[#allocation5 + $0x2d0] sm:$0xff]
    %v121 = vld [vmem:[#allocation5 + $0x2e0] sm:$0xff]
    %v122 = vld [vmem:[#allocation5 + $0x2f0] sm:$0xff]
    %v123 = vld [vmem:[#allocation5 + $0x300] sm:$0xff]
    %v124 = vld [vmem:[#allocation5 + $0x308] sm:$0xff]
    %125 = vmatpush.msra.mxu0 %v73
    %126 = vmatpush.msra.mxu0 %v71
    %127 = vmatpush.msra.mxu0 %v69
    %128 = vmatpush.msra.mxu0 %v67
    %129 = vmatpush.msra.mxu0 %v65
    %130 = vmatpush.msra.mxu0 %v63
    %131 = vmatpush.msra.mxu0 %v61
    %132 = vmatpush.msra.mxu0 %v59
    %133 = vmatpush.msra.mxu0 %v57
    %134 = vmatpush.msra.mxu0 %v55
    %135 = vmatpush.msra.mxu0 %v53
    %136 = vmatpush.msra.mxu0 %v51
    %137 = vmatpush.msra.mxu0 %v49
    %138 = vmatpush.msra.mxu0 %v47
    %139 = vmatpush.msra.mxu0 %v45
    %140 = vmatpush.msra.mxu0 %v43
    %141 = vmatmul.f32.gmra.mxu0 %v42
    %v142 = vpop.f32.mrf.mxu0
    %v143 = vadd.f32 0.0, %v142
    %144 = vdwg.mxu0
    %145 = vmatpush.msra.mxu0 %v74
    %146 = vmatpush.msra.mxu0 %v72
    %147 = vmatpush.msra.mxu0 %v70
    %148 = vmatpush.msra.mxu0 %v68
    %149 = vmatpush.msra.mxu0 %v66
    %150 = vmatpush.msra.mxu0 %v64
    %151 = vmatpush.msra.mxu0 %v62
    %152 = vmatpush.msra.mxu0 %v60
    %153 = vmatpush.msra.mxu0 %v58
    %154 = vmatpush.msra.mxu0 %v56
    %155 = vmatpush.msra.mxu0 %v54
    %156 = vmatpush.msra.mxu0 %v52
    %157 = vmatpush.msra.mxu0 %v50
    %158 = vmatpush.msra.mxu0 %v48
    %159 = vmatpush.msra.mxu0 %v46
    %160 = vmatpush.msra.mxu0 %v44
    %161 = vmatmul.f32.gmra.mxu0 %v42
    %v162 = vpop.f32.mrf.mxu0
    %v163 = vadd.f32 0.0, %v162
    %164 = vdwg.mxu0
    %v165 = vperm.slane %v123, 0
    %v166 = vadd.f32 %v143, %v165
    %167 = vadd.xlane.f32.xlu0 %v166
    %v168 = vpop.xlane.xlu0 %167
    %v169 = vmul.f32 %v166, %v166
    %170 = vadd.xlane.f32.xlu0 %v169
    %v171 = vpop.xlane.xlu0 %170
    %v172 = vmul.f32 %v168, 0.03125
    %v173 = vmul.f32 %v171, 0.03125
    %v174 = vmul.f32 %v172, %v172
    %v175 = vsub.f32 %v173, %v174
    %v176 = vsub.f32 %v166, %v172
    %v177 = vadd.f32 %v175, 1e-05
    %v178 = vrsqrt.pop %v177
    %v179 = vmul.f32 %v178, %v177
    %v180 = vmul.f32 %v179, %v178
    %v181 = vmul.f32 0.5, %v180
    %v182 = vsub.f32 1.5, %v181
    %v183 = vmul.f32 %v178, %v182
    %vm184 = vweird.f32 %v177
    %vm185 = vweird.f32 %v178
    %vm186 = vmor %vm184, %vm185
    %v187 = vsel %vm186, %v178, %v183
    %v188 = vmul.f32 %v176, %v187
    %v189 = vperm.slane %v123, 2
    %v190 = vmul.f32 %v188, %v189
    %v191 = vperm.slane %v123, 3
    %v192 = vadd.f32 %v190, %v191
    %v193 = vtanh.pop %v192
    %v194 = vperm.slane %v124, 0
    %v195 = vadd.f32 %v163, %v194
    %196 = vadd.xlane.f32.xlu0 %v195
    %v197 = vpop.xlane.xlu0 %196
    %v198 = vmul.f32 %v195, %v195
    %199 = vadd.xlane.f32.xlu0 %v198
    %v200 = vpop.xlane.xlu0 %199
    %v201 = vmul.f32 %v197, 0.03125
    %v202 = vmul.f32 %v200, 0.03125
    %v203 = vmul.f32 %v201, %v201
    %v204 = vsub.f32 %v202, %v203
    %v205 = vsub.f32 %v195, %v201
    %v206 = vadd.f32 %v204, 1e-05
    %v207 = vrsqrt.pop %v206
    %v208 = vmul.f32 %v207, %v206
    %v209 = vmul.f32 %v208, %v207
    %v210 = vmul.f32 0.5, %v209
    %v211 = vsub.f32 1.5, %v210
    %v212 = vmul.f32 %v207, %v211
    %vm213 = vweird.f32 %v206
    %vm214 = vweird.f32 %v207
    %vm215 = vmor %vm213, %vm214
    %v216 = vsel %vm215, %v207, %v212
    %v217 = vmul.f32 %v205, %v216
    %v218 = vperm.slane %v124, 2
    %v219 = vmul.f32 %v217, %v218
    %v220 = vperm.slane %v124, 3
    %v221 = vadd.f32 %v219, %v220
    %v222 = vtanh.pop %v221
    %223 = vmatpush.msra.mxu0 %v105
    %224 = vmatpush.msra.mxu0 %v103
    %225 = vmatpush.msra.mxu0 %v101
    %226 = vmatpush.msra.mxu0 %v99
    %227 = vmatpush.msra.mxu0 %v97
    %228 = vmatpush.msra.mxu0 %v95
    %229 = vmatpush.msra.mxu0 %v93
    %230 = vmatpush.msra.mxu0 %v91
    %231 = vmatpush.msra.mxu0 %v89
    %232 = vmatpush.msra.mxu0 %v87
    %233 = vmatpush.msra.mxu0 %v85
    %234 = vmatpush.msra.mxu0 %v83
    %235 = vmatpush.msra.mxu0 %v81
    %236 = vmatpush.msra.mxu0 %v79
    %237 = vmatpush.msra.mxu0 %v77
    %238 = vmatpush.msra.mxu0 %v75
    %239 = vmatmul.f32.gmra.mxu0 %v193
    %v240 = vpop.f32.mrf.mxu0
    %v241 = vadd.f32 0.0, %v240
    %242 = vdwg.mxu0
    %243 = vmatpush.msra.mxu0 %v106
    %244 = vmatpush.msra.mxu0 %v104
    %245 = vmatpush.msra.mxu0 %v102
    %246 = vmatpush.msra.mxu0 %v100
    %247 = vmatpush.msra.mxu0 %v98
    %248 = vmatpush.msra.mxu0 %v96
    %249 = vmatpush.msra.mxu0 %v94
    %250 = vmatpush.msra.mxu0 %v92
    %251 = vmatpush.msra.mxu0 %v90
    %252 = vmatpush.msra.mxu0 %v88
    %253 = vmatpush.msra.mxu0 %v86
    %254 = vmatpush.msra.mxu0 %v84
    %255 = vmatpush.msra.mxu0 %v82
    %256 = vmatpush.msra.mxu0 %v80
    %257 = vmatpush.msra.mxu0 %v78
    %258 = vmatpush.msra.mxu0 %v76
    %259 = vmatmul.f32.gmra.mxu0 %v193
    %v260 = vpop.f32.mrf.mxu0
    %v261 = vadd.f32 0.0, %v260
    %262 = vdwg.mxu0
    %v263 = vadd.f32 %v241, %v194
    %264 = vadd.xlane.f32.xlu0 %v263
    %v265 = vpop.xlane.xlu0 %264
    %v266 = vmul.f32 %v263, %v263
    %267 = vadd.xlane.f32.xlu0 %v266
    %v268 = vpop.xlane.xlu0 %267
    %v269 = vmul.f32 %v265, 0.03125
    %v270 = vmul.f32 %v268, 0.03125
    %v271 = vmul.f32 %v269, %v269
    %v272 = vsub.f32 %v270, %v271
    %v273 = vsub.f32 %v263, %v269
    %v274 = vadd.f32 %v272, 1e-05
    %v275 = vrsqrt.pop %v274
    %v276 = vmul.f32 %v275, %v274
    %v277 = vmul.f32 %v276, %v275
    %v278 = vmul.f32 0.5, %v277
    %v279 = vsub.f32 1.5, %v278
    %v280 = vmul.f32 %v275, %v279
    %vm281 = vweird.f32 %v274
    %vm282 = vweird.f32 %v275
    %vm283 = vmor %vm281, %vm282
    %v284 = vsel %vm283, %v275, %v280
    %v285 = vmul.f32 %v273, %v284
    %v286 = vmul.f32 %v285, %v218
    %v287 = vadd.f32 %v286, %v220
    %v288 = vtanh.pop %v287
    %v289 = vadd.f32 %v222, %v288
    %v290 = vperm.slane %v123, 1
    %v291 = vadd.f32 %v261, %v290
    %292 = vmatpush.msra.mxu0 %v122
    %293 = vmatpush.msra.mxu0 %v121
    %294 = vmatpush.msra.mxu0 %v120
    %295 = vmatpush.msra.mxu0 %v119
    %296 = vmatpush.msra.mxu0 %v118
    %297 = vmatpush.msra.mxu0 %v117
    %298 = vmatpush.msra.mxu0 %v116
    %299 = vmatpush.msra.mxu0 %v115
    %300 = vmatpush.msra.mxu0 %v114
    %301 = vmatpush.msra.mxu0 %v113
    %302 = vmatpush.msra.mxu0 %v112
    %303 = vmatpush.msra.mxu0 %v111
    %304 = vmatpush.msra.mxu0 %v110
    %305 = vmatpush.msra.mxu0 %v109
    %306 = vmatpush.msra.mxu0 %v108
    %307 = vmatpush.msra.mxu0 %v107
    %308 = vmatmul.f32.gmra.mxu0 %v289
    %v309 = vpop.f32.mrf.mxu0
    %v310 = vadd.f32 0.0, %v309
    %311 = vdwg.mxu0
    %v312 = vadd.f32 %v291, %v310
    %v313 = vadd.f32 %v312, %v290
    %v314 = vxor.u32 %v313, 2147483648
    %v315 = vmul.f32 %v314, 1.442695
    %v316 = vpow.pop %v315
    %v317 = vadd.f32 %v316, 1.0
    %v318 = vrcp.pop %v317
    %v319 = vmul.f32 %v317, %v318
    %v320 = vsub.f32 1.0, %v319
    %v321 = vmul.f32 %v318, %v320
    %v322 = vadd.f32 %v318, %v321
    %vm323 = vweird.f32 %v317
    %vm324 = vweird.f32 %v318
    %vm325 = vmor %vm323, %vm324
    %v326 = vsel %vm325, %v318, %v322
    %v327 = vand.u32 2147483647, %v317
    %vm328 = vcmp.eq.f32.partialorder %v327, 8.507059e+37
    %v329 = vand.u32 %v317, 2147483648
    %v330 = vor.u32 1.1754944e-38, %v329
    %v331 = vsel %vm328, %v330, %v326
    %v332 = vmul.f32 1.0, %v331
    %333 = vst [vmem:[#allocation7] sm:$0xff] %v332
    // Predicated region
    $region18: #{_forward_padded.1} parent=1 // pred_check
      _
    $region19: #{_forward_padded.1} parent=1 // pred_check_branch
      %335 = sbr.rel (0) target = $region21
    $region20: #{_forward_padded.1} parent=1 // pred_region
      %337 = vsyncadd [#allocation4], 0
      %s339 = sshll.u32 [#allocation7], 4
      %s340 = int_to_ptr.vmem [resolvable:$true] %s339
      %s341 = sshll.u32 %s2, 4
      %s342 = int_to_ptr.hbm [resolvable:$true] %s341
      %344 = dma.vmem_to_hbm [thread:$0]  %s340, 128, %s342, [#allocation4]
    $region21: #{_forward_padded.1} parent=1 // pred_fallthru
      _
    // Predicated region
    $region22: #{_forward_padded.1} parent=1 // pred_check
      _
    $region23: #{_forward_padded.1} parent=1 // pred_check_branch
      %346 = sbr.rel (0) target = $region25
    $region24: #{_forward_padded.1} parent=1 // pred_region
      %348 = dma.done [#allocation4], 128
    $region25: #{_forward_padded.1} parent=1 // pred_fallthru
      _
    %349 = vsyncpa [#allocation3], 1
    %350 = vsyncpa [#allocation6], 1
    %351 = vsyncpa [#allocation4], 1

</llo_original>
